<compile_context>
chip_gen: v6e
topology: v6e:2x2x1
jax: 0.10.0
libtpu: 0.0.40
codegen_flags: <defaults>
</compile_context>

<pallas_src>
import functools

import jax
import jax.numpy as jnp
import numpy as np
from jax.experimental import pallas as pl
from jax.experimental.pallas import tpu as pltpu

POSE_DIM = 7            # 3 translation + 4 quaternion
MAX_BLOCK_N = 8192      # rows per grid step (multiple of 8)


def _posenet_criterion_kernel(n_rows, block_n, beta_ref, gamma_ref,
                              pred_ref, targ_ref,
                              loss_ref, tloss_ref, qloss_ref, acc_ref):
    """Grid axis 0 tiles the row dim of the (N, 7) inputs.

    Per step: |pred - targ| (f32) reduced over rows into a (1, 7) accumulator.
    Final step: split translation/quaternion columns, normalize, combine with
    the learned beta/gamma weights.
    """
    i = pl.program_id(0)
    last = pl.num_programs(0) - 1

    @pl.when(i == 0)
    def _():
        acc_ref[...] = jnp.zeros_like(acc_ref)

    pred = pred_ref[...].astype(jnp.float32)          # (block_n, 7)
    targ = targ_ref[...].astype(jnp.float32)
    d = jnp.abs(pred - targ)

    ragged = (n_rows % block_n) != 0                  # static (Python) decision

    if ragged:
        @pl.when(i < last)
        def _():
            acc_ref[...] += jnp.sum(d, axis=0, keepdims=True)

        @pl.when(i == last)
        def _():
            # Mask rows past the true N (last block reads past the array end).
            row = i * block_n + jax.lax.broadcasted_iota(jnp.int32, d.shape, 0)
            dm = jnp.where(row < n_rows, d, 0.0)
            acc_ref[...] += jnp.sum(dm, axis=0, keepdims=True)
    else:
        acc_ref[...] += jnp.sum(d, axis=0, keepdims=True)

    @pl.when(i == last)
    def _():
        col = acc_ref[...]                                            # (1, 7)
        lane = jax.lax.broadcasted_iota(jnp.int32, col.shape, 1)      # (1, 7)
        t_sum = jnp.sum(jnp.where(lane < 3, col, 0.0), keepdims=True)   # (1, 1)
        q_sum = jnp.sum(jnp.where(lane >= 3, col, 0.0), keepdims=True)  # (1, 1)

        t_loss = t_sum / jnp.float32(n_rows * 3)
        q_loss = q_sum / jnp.float32(n_rows * 4)

        beta = beta_ref[0]
        gamma = gamma_ref[0]
        loss = jnp.exp(-beta) * t_loss + beta + jnp.exp(-gamma) * q_loss + gamma

        loss_ref[...] = loss
        tloss_ref[...] = t_loss
        qloss_ref[...] = q_loss


@functools.partial(jax.jit, static_argnames=("max_block_n",))
def posenet_criterion(pred, targ, beta, gamma, *, max_block_n=MAX_BLOCK_N):
    """Pallas implementation of PoseNetCriterion.forward.

    pred, targ: (N, 7) or (B, M, 7), any float dtype (streamed natively);
    beta, gamma: shape-(1,) (or scalar) float params.
    Returns (loss, t_loss, q_loss) as float32 scalars.
    """
    if pred.ndim == 3:  # mirror the PyTorch .view(-1, *s[2:])
        pred = pred.reshape(-1, pred.shape[-1])
        targ = targ.reshape(-1, targ.shape[-1])
    n, d = pred.shape
    assert d == POSE_DIM, f"expected last dim {POSE_DIM}, got {d}"
    assert n > 0, "empty batch would divide by zero (matches PyTorch NaN otherwise)"

    # Whole array as a single block when it fits; otherwise tile rows in
    # multiples of 8 and mask the ragged tail in-kernel.
    block_n = n if n <= max_block_n else max_block_n
    grid = (pl.cdiv(n, block_n),)

    beta = jnp.asarray(beta, jnp.float32).reshape(1)
    gamma = jnp.asarray(gamma, jnp.float32).reshape(1)

    kernel = functools.partial(_posenet_criterion_kernel, n, block_n)
    scalar_out = jax.ShapeDtypeStruct((1, 1), jnp.float32)

    loss, t_loss, q_loss = pl.pallas_call(
        kernel,
        out_shape=(scalar_out, scalar_out, scalar_out),
        grid_spec=pltpu.PrefetchScalarGridSpec(
            num_scalar_prefetch=0,
            grid=grid,
            in_specs=[
                pl.BlockSpec(memory_space=pltpu.MemorySpace.SMEM),        # beta
                pl.BlockSpec(memory_space=pltpu.MemorySpace.SMEM),        # gamma
                pl.BlockSpec((block_n, POSE_DIM), lambda i: (i, 0)),      # pred (N, 7)
                pl.BlockSpec((block_n, POSE_DIM), lambda i: (i, 0)),      # targ (N, 7)
            ],
            out_specs=[
                pl.BlockSpec((1, 1), lambda i: (0, 0)),
                pl.BlockSpec((1, 1), lambda i: (0, 0)),
                pl.BlockSpec((1, 1), lambda i: (0, 0)),
            ],
            scratch_shapes=[
                pltpu.VMEM((1, POSE_DIM), jnp.float32),   # running column-sum accumulator
            ],
        ),
        compiler_params=pltpu.CompilerParams(
            dimension_semantics=("arbitrary",),           # reduction over row tiles
            vmem_limit_bytes=32 * 1024 * 1024,            # safe for v5e default scoped VMEM
        ),
    )(beta, gamma, pred, targ)

    return loss[0, 0], t_loss[0, 0], q_loss[0, 0]


def _reference(pred, targ, beta, gamma):
    """Pure-JAX reference matching the PyTorch module."""
    if pred.ndim == 3:
        pred = pred.reshape(-1, pred.shape[-1])
        targ = targ.reshape(-1, targ.shape[-1])
    pred = pred.astype(jnp.float32)
    targ = targ.astype(jnp.float32)
    t_loss = jnp.mean(jnp.abs(pred[..., :3] - targ[..., :3]))
    q_loss = jnp.mean(jnp.abs(pred[..., 3:] - targ[..., 3:]))
    b = jnp.asarray(beta, jnp.float32).reshape(())
    g = jnp.asarray(gamma, jnp.float32).reshape(())
    loss = jnp.exp(-b) * t_loss + b + jnp.exp(-g) * q_loss + g
    return loss, t_loss, q_loss


def _check(pred, targ, beta, gamma, **kwargs):
    loss, t_loss, q_loss = posenet_criterion(pred, targ, beta, gamma, **kwargs)
    jax.block_until_ready((loss, t_loss, q_loss))
    ref_loss, ref_t, ref_q = _reference(pred, targ, beta, gamma)
    np.testing.assert_allclose(np.asarray(loss), np.asarray(ref_loss), rtol=1e-5, atol=1e-5)
    np.testing.assert_allclose(np.asarray(t_loss), np.asarray(ref_t), rtol=1e-5, atol=1e-5)
    np.testing.assert_allclose(np.asarray(q_loss), np.asarray(ref_q), rtol=1e-5, atol=1e-5)


if __name__ == "__main__":
    key = jax.random.PRNGKey(0)
    k1, k2, k3, k4, k5, k6, k7, k8 = jax.random.split(key, 8)

    # Matches PoseNetCriterion(beta=0, gamma=0) parameter init.
    beta0 = jnp.zeros((1,), dtype=jnp.float32)
    gamma0 = jnp.zeros((1,), dtype=jnp.float32)

    # Case 1: small 2-D batch of poses (tx,ty,tz, qw,qx,qy,qz), f32.
    N = 16
    pred = jax.random.normal(k1, (N, POSE_DIM), dtype=jnp.float32)
    targ = jax.random.normal(k2, (N, POSE_DIM), dtype=jnp.float32)
    _check(pred, targ, beta0, gamma0)

    # Case 2: 3-D (B, M, 7) input exercising the .view(-1, 7) path.
    pred3 = jax.random.normal(k3, (2, 6, POSE_DIM), dtype=jnp.float32)
    targ3 = jax.random.normal(k4, (2, 6, POSE_DIM), dtype=jnp.float32)
    _check(pred3, targ3, beta0, gamma0)

    # Case 3: native bf16 inputs (kernel streams bf16 and upcasts per block).
    predb = jax.random.normal(k5, (1000, POSE_DIM), dtype=jnp.float32).astype(jnp.bfloat16)
    targb = jax.random.normal(k6, (1000, POSE_DIM), dtype=jnp.float32).astype(jnp.bfloat16)
    _check(predb, targb, beta0, gamma0)

    # Case 4: multi-block grid with ragged last block (in-kernel tail masking),
    # plus non-zero learned beta/gamma.
    betaL = jnp.array([-3.0], dtype=jnp.float32)
    gammaL = jnp.array([0.5], dtype=jnp.float32)
    predL = jax.random.normal(k7, (100, POSE_DIM), dtype=jnp.float32)
    targL = jax.random.normal(k8, (100, POSE_DIM), dtype=jnp.float32)
    _check(predL, targL, betaL, gammaL, max_block_n=32)

    print("KERNEL_OK")
</pallas_src>

<mosaic_0001>
module attributes {stable_mosaic.version = 11 : i64} {
  func.func @_posenet_criterion_kernel(%arg0: i32, %arg1: memref<1xf32, #tpu.memory_space<smem>>, %arg2: memref<1xf32, #tpu.memory_space<smem>>, %arg3: memref<16x7xf32, #tpu.memory_space<vmem>>, %arg4: memref<16x7xf32, #tpu.memory_space<vmem>>, %arg5: memref<1x1xf32, #tpu.memory_space<vmem>>, %arg6: memref<1x1xf32, #tpu.memory_space<vmem>>, %arg7: memref<1x1xf32, #tpu.memory_space<vmem>>, %arg8: memref<1x7xf32, #tpu.memory_space<vmem>>) attributes {dimension_semantics = [#tpu.dimension_semantics<arbitrary>], iteration_bounds = array<i64: 1>, scalar_prefetch = 0 : i64, scratch_operands = 1 : i64, tpu.core_type = #tpu.core_type<tc>, window_params = [{transform_indices = @transform_0, window_bounds = array<i64: 1>}, {transform_indices = @transform_1, window_bounds = array<i64: 1>}, {transform_indices = @transform_2, window_bounds = array<i64: 16, 7>}, {transform_indices = @transform_3, window_bounds = array<i64: 16, 7>}, {pipeline_mode = #tpu.pipeline_mode<synchronous>, transform_indices = @transform_4, window_bounds = array<i64: 1, 1>}, {pipeline_mode = #tpu.pipeline_mode<synchronous>, transform_indices = @transform_5, window_bounds = array<i64: 1, 1>}, {pipeline_mode = #tpu.pipeline_mode<synchronous>, transform_indices = @transform_6, window_bounds = array<i64: 1, 1>}]} {
    %c0_i32 = arith.constant 0 : i32
    %0 = arith.cmpi eq, %arg0, %c0_i32 : i32
    %1 = arith.extui %0 : i1 to i32
    %c0_i32_0 = arith.constant 0 : i32
    %2 = arith.cmpi ne, %1, %c0_i32_0 : i32
    scf.if %2 {
      %cst_10 = arith.constant 0.000000e+00 : f32
      %15 = vector.broadcast %cst_10 : f32 to vector<1x7xf32>
      %c0_11 = arith.constant 0 : index
      %c0_12 = arith.constant 0 : index
      %16 = vector.load %arg8[%c0_11, %c0_12] : memref<1x7xf32, #tpu.memory_space<vmem>>, vector<1x7xf32>
      tpu.vector_store %arg8[%c0_11, %c0_12], %15 {strides = array<i32>} : memref<1x7xf32, #tpu.memory_space<vmem>>, vector<1x7xf32>,
    } else {
    }
    %c0 = arith.constant 0 : index
    %c0_1 = arith.constant 0 : index
    %3 = vector.load %arg3[%c0, %c0_1] : memref<16x7xf32, #tpu.memory_space<vmem>>, vector<16x7xf32>
    %c0_2 = arith.constant 0 : index
    %c0_3 = arith.constant 0 : index
    %4 = vector.load %arg4[%c0_2, %c0_3] : memref<16x7xf32, #tpu.memory_space<vmem>>, vector<16x7xf32>
    %5 = arith.subf %3, %4 : vector<16x7xf32>
    %6 = math.absf %5 : vector<16x7xf32>
    %c0_4 = arith.constant 0 : index
    %c0_5 = arith.constant 0 : index
    %7 = vector.load %arg8[%c0_4, %c0_5] : memref<1x7xf32, #tpu.memory_space<vmem>>, vector<1x7xf32>
    %cst = arith.constant dense<0.000000e+00> : vector<7xf32>
    %8 = vector.multi_reduction <add>, %6, %cst [0] : vector<16x7xf32> to vector<7xf32>
    %9 = vector.shape_cast %8 : vector<7xf32> to vector<1x7xf32>
    %10 = arith.addf %7, %9 : vector<1x7xf32>
    %c0_6 = arith.constant 0 : index
    %c0_7 = arith.constant 0 : index
    %11 = vector.load %arg8[%c0_6, %c0_7] : memref<1x7xf32, #tpu.memory_space<vmem>>, vector<1x7xf32>
    tpu.vector_store %arg8[%c0_6, %c0_7], %10 {strides = array<i32>} : memref<1x7xf32, #tpu.memory_space<vmem>>, vector<1x7xf32>,
    %c0_i32_8 = arith.constant 0 : i32
    %12 = arith.cmpi eq, %arg0, %c0_i32_8 : i32
    %13 = arith.extui %12 : i1 to i32
    %c0_i32_9 = arith.constant 0 : i32
    %14 = arith.cmpi ne, %13, %c0_i32_9 : i32
    scf.if %14 {
      %c0_10 = arith.constant 0 : index
      %c0_11 = arith.constant 0 : index
      %15 = vector.load %arg8[%c0_10, %c0_11] : memref<1x7xf32, #tpu.memory_space<vmem>>, vector<1x7xf32>
      %16 = tpu.iota {dimensions = array<i32: 1>} : vector<1x7xi32>
      %c3_i32 = arith.constant 3 : i32
      %17 = vector.broadcast %c3_i32 : i32 to vector<1x7xi32>
      %18 = arith.cmpi slt, %16, %17 : vector<1x7xi32>
      %cst_12 = arith.constant 0.000000e+00 : f32
      %19 = vector.broadcast %cst_12 : f32 to vector<1x7xf32>
      %20 = arith.select %18, %15, %19 : vector<1x7xi1>, vector<1x7xf32>
      %21 = vector.shape_cast %20 : vector<1x7xf32> to vector<1x1x7xf32>
      %cst_13 = arith.constant dense<0.000000e+00> : vector<1xf32>
      %22 = vector.multi_reduction <add>, %21, %cst_13 [1, 2] : vector<1x1x7xf32> to vector<1xf32>
      %23 = vector.shape_cast %22 : vector<1xf32> to vector<1x1x1xf32>
      %24 = vector.extract %23[0, 0, 0] : f32 from vector<1x1x1xf32>
      %25 = vector.broadcast %24 : f32 to vector<1x1xf32>
      %c3_i32_14 = arith.constant 3 : i32
      %26 = vector.broadcast %c3_i32_14 : i32 to vector<1x7xi32>
      %27 = arith.cmpi sge, %16, %26 : vector<1x7xi32>
      %cst_15 = arith.constant 0.000000e+00 : f32
      %28 = vector.broadcast %cst_15 : f32 to vector<1x7xf32>
      %29 = arith.select %27, %15, %28 : vector<1x7xi1>, vector<1x7xf32>
      %30 = vector.shape_cast %29 : vector<1x7xf32> to vector<1x1x7xf32>
      %cst_16 = arith.constant dense<0.000000e+00> : vector<1xf32>
      %31 = vector.multi_reduction <add>, %30, %cst_16 [1, 2] : vector<1x1x7xf32> to vector<1xf32>
      %32 = vector.shape_cast %31 : vector<1xf32> to vector<1x1x1xf32>
      %33 = vector.extract %32[0, 0, 0] : f32 from vector<1x1x1xf32>
      %34 = vector.broadcast %33 : f32 to vector<1x1xf32>
      %cst_17 = arith.constant 4.800000e+01 : f32
      %35 = vector.broadcast %cst_17 : f32 to vector<1x1xf32>
      %36 = arith.divf %25, %35 : vector<1x1xf32>
      %cst_18 = arith.constant 6.400000e+01 : f32
      %37 = vector.broadcast %cst_18 : f32 to vector<1x1xf32>
      %38 = arith.divf %34, %37 : vector<1x1xf32>
      %c0_19 = arith.constant 0 : index
      %39 = memref.load %arg1[%c0_19] : memref<1xf32, #tpu.memory_space<smem>>
      %c0_20 = arith.constant 0 : index
      %40 = memref.load %arg2[%c0_20] : memref<1xf32, #tpu.memory_space<smem>>
      %cst_21 = arith.constant 0.000000e+00 : f32
      %41 = arith.subf %cst_21, %39 : f32
      %42 = math.exp %41 : f32
      %43 = vector.broadcast %42 : f32 to vector<1x1xf32>
      %44 = arith.mulf %43, %36 : vector<1x1xf32>
      %45 = vector.broadcast %39 : f32 to vector<1x1xf32>
      %46 = arith.addf %44, %45 : vector<1x1xf32>
      %cst_22 = arith.constant 0.000000e+00 : f32
      %47 = arith.subf %cst_22, %40 : f32
      %48 = math.exp %47 : f32
      %49 = vector.broadcast %48 : f32 to vector<1x1xf32>
      %50 = arith.mulf %49, %38 : vector<1x1xf32>
      %51 = arith.addf %46, %50 : vector<1x1xf32>
      %52 = vector.broadcast %40 : f32 to vector<1x1xf32>
      %53 = arith.addf %51, %52 : vector<1x1xf32>
      %c0_23 = arith.constant 0 : index
      %c0_24 = arith.constant 0 : index
      %54 = vector.load %arg5[%c0_23, %c0_24] : memref<1x1xf32, #tpu.memory_space<vmem>>, vector<1x1xf32>
      tpu.vector_store %arg5[%c0_23, %c0_24], %53 {strides = array<i32>} : memref<1x1xf32, #tpu.memory_space<vmem>>, vector<1x1xf32>,
      %c0_25 = arith.constant 0 : index
      %c0_26 = arith.constant 0 : index
      %55 = vector.load %arg6[%c0_25, %c0_26] : memref<1x1xf32, #tpu.memory_space<vmem>>, vector<1x1xf32>
      tpu.vector_store %arg6[%c0_25, %c0_26], %36 {strides = array<i32>} : memref<1x1xf32, #tpu.memory_space<vmem>>, vector<1x1xf32>,
      %c0_27 = arith.constant 0 : index
      %c0_28 = arith.constant 0 : index
      %56 = vector.load %arg7[%c0_27, %c0_28] : memref<1x1xf32, #tpu.memory_space<vmem>>, vector<1x1xf32>
      tpu.vector_store %arg7[%c0_27, %c0_28], %38 {strides = array<i32>} : memref<1x1xf32, #tpu.memory_space<vmem>>, vector<1x1xf32>,
    } else {
    }
    return
  }
  func.func @transform_0(%arg0: i32) -> i32 {
    %c0_i32 = arith.constant 0 : i32
    %c0_i32_0 = arith.constant 0 : i32
    return %c0_i32 : i32
  }
  func.func @transform_1(%arg0: i32) -> i32 {
    %c0_i32 = arith.constant 0 : i32
    %c0_i32_0 = arith.constant 0 : i32
    return %c0_i32 : i32
  }
  func.func @transform_2(%arg0: i32) -> (i32, i32) {
    %c0_i32 = arith.constant 0 : i32
    %c0_i32_0 = arith.constant 0 : i32
    return %arg0, %c0_i32 : i32, i32
  }
  func.func @transform_3(%arg0: i32) -> (i32, i32) {
    %c0_i32 = arith.constant 0 : i32
    %c0_i32_0 = arith.constant 0 : i32
    return %arg0, %c0_i32 : i32, i32
  }
  func.func @transform_4(%arg0: i32) -> (i32, i32) {
    %c0_i32 = arith.constant 0 : i32
    %c0_i32_0 = arith.constant 0 : i32
    %c0_i32_1 = arith.constant 0 : i32
    return %c0_i32, %c0_i32_0 : i32, i32
  }
  func.func @transform_5(%arg0: i32) -> (i32, i32) {
    %c0_i32 = arith.constant 0 : i32
    %c0_i32_0 = arith.constant 0 : i32
    %c0_i32_1 = arith.constant 0 : i32
    return %c0_i32, %c0_i32_0 : i32, i32
  }
  func.func @transform_6(%arg0: i32) -> (i32, i32) {
    %c0_i32 = arith.constant 0 : i32
    %c0_i32_0 = arith.constant 0 : i32
    %c0_i32_1 = arith.constant 0 : i32
    return %c0_i32, %c0_i32_0 : i32, i32
  }
}

</mosaic_0001>

<llo_original>
// kernel: posenet_criterion.1
$region0: #{posenet_criterion.1}
  #allocation0 [shape = 'u32[]', space=smem, size = 0x4, offset = 0x4, fixed_abs, tag = 'smem constant byte address 0x4 - core index']
  #allocation1 [shape = 'u32[144,128]{1,0:T(1,128)}', space=vmem, size = 0x12000, scoped, tag = 'internal scratch']
  #allocation2 [shape = 'f32[1,7]{1,0:T(1,128)}', space=vmem, size = 0x200, scoped, tag = 'scratch operand']
  #allocation3 [shape = 'f32[1]{0:T(128)S(6)}', space=smem, size = 0x200, scoped, tag = 'scoped memory for posenet_criterion.1']
  #allocation4 [shape = 'f32[1]{0:T(128)S(6)}', space=smem, size = 0x200, scoped, tag = 'scoped memory for posenet_criterion.1']
  %s0 = inlined_call_operand.<no memory space> [shape: f32[1], index: 0, kind: input, shape index: {}]
  %s1 = inlined_call_operand.<no memory space> [shape: f32[1], index: 1, kind: input, shape index: {}]
  %s2 = inlined_call_operand.vmem [shape: f32[16,7], index: 2, kind: input, shape index: {}]
  %s3 = inlined_call_operand.vmem [shape: f32[16,7], index: 3, kind: input, shape index: {}]
  %s4 = inlined_call_operand.hbm [shape: f32[1,1], index: 4, kind: output, shape index: {0}]
  %s5 = inlined_call_operand.hbm [shape: f32[1,1], index: 5, kind: output, shape index: {1}]
  %s6 = inlined_call_operand.hbm [shape: f32[1,1], index: 6, kind: output, shape index: {2}]
  %7 = xla_tuple %s4, %s5, %s6
  %s8 = sld [smem:[#allocation0]]
  $region50: #{posenet_criterion.1} parent=0
    _
  %s10 = ssub.s32 1, %s8
  %s11 = scalar_select 0, %s10, %s8
  %12 = sst [smem:[#allocation3]] %s0
  %13 = sst [smem:[#allocation4]] %s1
  $region1: #{posenet_criterion.1} parent=0
    #allocation5 [shape = 'u8[512]{0}', space=vmem, size = 0x400, scoped, tag = 'output window, operand 0, single buffered']
    #allocation6 [shape = 's32[1]{0}', space=sflag, size = 0x4, scoped, tag = 'scoped memory for posenet_criterion.1']
    #allocation7 [shape = 'u8[512]{0}', space=vmem, size = 0x400, scoped, tag = 'output window, operand 1, single buffered']
    #allocation8 [shape = 's32[1]{0}', space=sflag, size = 0x4, scoped, tag = 'scoped memory for posenet_criterion.1']
    #allocation9 [shape = 'u8[512]{0}', space=vmem, size = 0x400, scoped, tag = 'output window, operand 2, single buffered']
    %14 = vsyncpa [#allocation6], 0
    %15 = vsyncpa [#allocation8], 0
    // Predicated region
    $region2: #{posenet_criterion.1} parent=1 // pred_check
      _
    $region3: #{posenet_criterion.1} parent=1 // pred_check_branch
      %17 = sbr.rel (0) target = $region5
    $region4: #{posenet_criterion.1} parent=1 // pred_region
      _
    $region5: #{posenet_criterion.1} parent=1 // pred_fallthru
      _
    // Predicated region
    $region6: #{posenet_criterion.1} parent=1 // pred_check
      _
    $region7: #{posenet_criterion.1} parent=1 // pred_check_branch
      %19 = sbr.rel (0) target = $region9
    $region8: #{posenet_criterion.1} parent=1 // pred_region
      _
    $region9: #{posenet_criterion.1} parent=1 // pred_fallthru
      _
    // Predicated region
    $region10: #{posenet_criterion.1} parent=1 // pred_check
      _
    $region11: #{posenet_criterion.1} parent=1 // pred_check_branch
      %21 = sbr.rel (0) target = $region13
    $region12: #{posenet_criterion.1} parent=1 // pred_region
      _
    $region13: #{posenet_criterion.1} parent=1 // pred_fallthru
      _
    // Predicated region
    $region14: #{posenet_criterion.1} parent=1 // pred_check
      _
    $region15: #{posenet_criterion.1} parent=1 // pred_check_branch
      %23 = sbr.rel (0) target = $region17
    $region16: #{posenet_criterion.1} parent=1 // pred_region
      _
    $region17: #{posenet_criterion.1} parent=1 // pred_fallthru
      _
    %p24 = scmp.eq.s32.totalorder 0, 0
    // Predicated region
    $region18: #{posenet_criterion.1} parent=1 // pred_check
      %p25 = pneg %p24
    $region19: #{posenet_criterion.1} parent=1 // pred_check_branch
      %27 = sbr.rel (%p25) target = $region21
    $region20: #{posenet_criterion.1} parent=1 // pred_region
      %vm28 = vcmask 49152
      %29 = vst.msk [vmem:[#allocation2] sm:$0x1] %vm28, 0.0
    $region21: #{posenet_criterion.1} parent=1 // pred_fallthru
      _
    %v30 = vld [vmem:[%s2] sm:$0xff]
    %v31 = vld [vmem:[%s2 + $0x8] sm:$0xff]
    %v32 = vld [vmem:[%s3] sm:$0xff]
    %v33 = vld [vmem:[%s3 + $0x8] sm:$0xff]
    %v34 = vsub.f32 %v30, %v32
    %v35 = vsub.f32 %v31, %v33
    %v36 = vand.u32 2147483647, %v34
    %v37 = vand.u32 2147483647, %v35
    %v38 = vld [vmem:[#allocation2] sm:$0x1]
    %vm39 = vcmask 56320
    %v40 = vsel %vm39, %v36, 0.0
    %v41 = vsel %vm39, %v37, 0.0
    %v42 = vadd.f32 %v40, %v41
    %v43 = vrot.slane %v42, 4
    %v44 = vadd.f32 %v42, %v43
    %v45 = vrot.slane %v44, 2
    %v46 = vadd.f32 %v44, %v45
    %v47 = vrot.slane %v46, 1
    %v48 = vadd.f32 %v46, %v47
    %v49 = vadd.f32 %v38, %v48
    %vm50 = vcmask 49152
    %51 = vst.msk [vmem:[#allocation2] sm:$0x1] %vm50, %v49
    // Predicated region
    $region22: #{posenet_criterion.1} parent=1 // pred_check
      %p52 = pneg %p24
    $region23: #{posenet_criterion.1} parent=1 // pred_check_branch
      %54 = sbr.rel (%p52) target = $region25
    $region24: #{posenet_criterion.1} parent=1 // pred_region
      %v55 = vld [vmem:[#allocation2] sm:$0x1]
      %v56 = vlaneseq
      %v57 = vand.u32 %v56, 127
      %vm58 = vcmp.lt.s32.totalorder %v57, 3
      %v59 = vsel %vm58, %v55, 0.0
      %v60 = vsel %vm50, %v59, 0.0
      %61 = vadd.xlane.f32.xlu0 %v60
      %v62 = vpop.xlane.xlu0 %61
      %v63 = vrot.slane %v62, 4
      %v64 = vadd.f32 %v62, %v63
      %v65 = vrot.slane %v64, 2
      %v66 = vadd.f32 %v64, %v65
      %v67 = vrot.slane %v66, 1
      %v68 = vadd.f32 %v66, %v67
      %s69 = vtos %v68
      %v70 = vstv %s69
      %vm71 = vcmp.ge.s32.totalorder %v57, 3
      %v72 = vsel %vm71, %v55, 0.0
      %v73 = vsel %vm50, %v72, 0.0
      %74 = vadd.xlane.f32.xlu0 %v73
      %v75 = vpop.xlane.xlu0 %74
      %v76 = vrot.slane %v75, 4
      %v77 = vadd.f32 %v75, %v76
      %v78 = vrot.slane %v77, 2
      %v79 = vadd.f32 %v77, %v78
      %v80 = vrot.slane %v79, 1
      %v81 = vadd.f32 %v79, %v80
      %s82 = vtos %v81
      %v83 = vstv %s82
      %v84 = vrcp.pop 48.0
      %v85 = vmul.f32 %v70, %v84
      %v86 = vrcp.pop 64.0
      %v87 = vmul.f32 %v83, %v86
      %s88 = sld [smem:[#allocation3]]
      %s89 = sld [smem:[#allocation4]]
      %s90 = ssub.f32 0.0, %s88
      %v91 = vstv %s90
      %v92 = vmul.f32 %v91, 1.442695
      %v93 = vpow.pop %v92
      %s94 = vtos %v93
      %v95 = vstv %s94
      %v96 = vmul.f32 %v95, %v85
      %v97 = vstv %s88
      %v98 = vadd.f32 %v96, %v97
      %s99 = ssub.f32 0.0, %s89
      %v100 = vstv %s99
      %v101 = vmul.f32 %v100, 1.442695
      %v102 = vpow.pop %v101
      %s103 = vtos %v102
      %v104 = vstv %s103
      %v105 = vmul.f32 %v104, %v87
      %v106 = vadd.f32 %v98, %v105
      %v107 = vstv %s89
      %v108 = vadd.f32 %v106, %v107
      %vm109 = vcmask 0
      %110 = vst.msk [vmem:[#allocation5] sm:$0x1] %vm109, %v108
      %111 = vst.msk [vmem:[#allocation7] sm:$0x1] %vm109, %v85
      %112 = vst.msk [vmem:[#allocation9] sm:$0x1] %vm109, %v87
    $region25: #{posenet_criterion.1} parent=1 // pred_fallthru
      _
    // Predicated region
    $region26: #{posenet_criterion.1} parent=1 // pred_check
      _
    $region27: #{posenet_criterion.1} parent=1 // pred_check_branch
      %114 = sbr.rel (0) target = $region29
    $region28: #{posenet_criterion.1} parent=1 // pred_region
      %s116 = ssub.s32 16, 16
      %117 = vsyncadd [#allocation6], %s116
      %s119 = sshll.u32 [#allocation5], 4
      %s120 = int_to_ptr.vmem [resolvable:$true] %s119
      %122 = dma.vmem_to_hbm [thread:$0]  %s120, 16, %s4, [#allocation6]
    $region29: #{posenet_criterion.1} parent=1 // pred_fallthru
      _
    // Predicated region
    $region30: #{posenet_criterion.1} parent=1 // pred_check
      _
    $region31: #{posenet_criterion.1} parent=1 // pred_check_branch
      %124 = sbr.rel (0) target = $region33
    $region32: #{posenet_criterion.1} parent=1 // pred_region
      %s126 = ssub.s32 16, 16
      %127 = vsyncadd [#allocation8], %s126
      %s129 = sshll.u32 [#allocation7], 4
      %s130 = int_to_ptr.vmem [resolvable:$true] %s129
      %132 = dma.vmem_to_hbm [thread:$0]  %s130, 16, %s5, [#allocation8]
    $region33: #{posenet_criterion.1} parent=1 // pred_fallthru
      _
    // Predicated region
    $region34: #{posenet_criterion.1} parent=1 // pred_check
      _
    $region35: #{posenet_criterion.1} parent=1 // pred_check_branch
      %134 = sbr.rel (0) target = $region37
    $region36: #{posenet_criterion.1} parent=1 // pred_region
      %s136 = ssub.s32 16, 16
      %137 = vsyncadd [#allocation8], %s136
      %s139 = sshll.u32 [#allocation9], 4
      %s140 = int_to_ptr.vmem [resolvable:$true] %s139
      %142 = dma.vmem_to_hbm [thread:$0]  %s140, 16, %s6, [#allocation8]
    $region37: #{posenet_criterion.1} parent=1 // pred_fallthru
      _
    // Predicated region
    $region38: #{posenet_criterion.1} parent=1 // pred_check
      _
    $region39: #{posenet_criterion.1} parent=1 // pred_check_branch
      %144 = sbr.rel (0) target = $region41
    $region40: #{posenet_criterion.1} parent=1 // pred_region
      %145 = dma.done [#allocation6], 16
    $region41: #{posenet_criterion.1} parent=1 // pred_fallthru
      _
    // Predicated region
    $region42: #{posenet_criterion.1} parent=1 // pred_check
      _
    $region43: #{posenet_criterion.1} parent=1 // pred_check_branch
      %147 = sbr.rel (0) target = $region45
    $region44: #{posenet_criterion.1} parent=1 // pred_region
      %148 = dma.done [#allocation8], 16
    $region45: #{posenet_criterion.1} parent=1 // pred_fallthru
      _
    // Predicated region
    $region46: #{posenet_criterion.1} parent=1 // pred_check
      _
    $region47: #{posenet_criterion.1} parent=1 // pred_check_branch
      %150 = sbr.rel (0) target = $region49
    $region48: #{posenet_criterion.1} parent=1 // pred_region
      %151 = dma.done [#allocation8], 16
    $region49: #{posenet_criterion.1} parent=1 // pred_fallthru
      _
    %152 = vsyncpa [#allocation6], 1
    %153 = vsyncpa [#allocation8], 1

</llo_original>
